<compile_context>
chip_gen: v6e
topology: v6e:2x2x1
jax: 0.10.0
libtpu: 0.0.40
codegen_flags: <defaults>
</compile_context>

<pallas_src>
import functools

import jax
import jax.numpy as jnp
from jax import lax
from jax.experimental import pallas as pl
from jax.experimental.pallas import tpu as pltpu


def _round_up(x: int, m: int) -> int:
    return ((x + m - 1) // m) * m


def _pair_basis_kernel(d_ref, ef_ref, w1d_ref, w1eT_ref, b1_ref, w2T_ref,
                       b2_ref, out_ref, *, cutoff):
    """One edge tile.  All heavy compute is lane-dense (edges on lanes).

    d_ref:    (1, T)   distances (free wrapper reshape of (E,))
    ef_ref:   (T, F)   edge features, exactly as stored by the caller
    w1d_ref:  (H, 1)   layer-1 weight column acting on the distance input
    w1eT_ref: (H, F)   layer-1 weights for the edge features (transposed)
    b1_ref:   (H, 1)
    w2T_ref:  (O, H)   layer-2 weights (transposed)
    b2_ref:   (O, 1)
    out_ref:  (T, O)   block of the caller-facing (E, O) output
    """
    d = d_ref[...]                                        # (1, T)

    # --- Taper (poly5 smooth cutoff), Horner form -----------------------------
    s = d * (1.0 / cutoff)
    s3 = s * s * s
    taper = 1.0 - s3 * (10.0 + s * (-15.0 + 6.0 * s))     # 1 - 10s^3 + 15s^4 - 6s^5
    taper = jnp.where(d > cutoff, 0.0, taper)             # (1, T)

    # --- Layer 1: h^T = W1_ef^T @ ef^T + w1_d * d + b1 (split matmul, no concat)
    # dot_general contracts on F for both operands, so no wrapper-side
    # transpose of edge_features is needed; the relayout is in-kernel XLU work.
    h = lax.dot_general(w1eT_ref[...], ef_ref[...],
                        (((1,), (1,)), ((), ())),
                        preferred_element_type=jnp.float32)      # (H, T)
    h = h + w1d_ref[...] * d + b1_ref[...]                       # broadcasts
    h = h * jax.nn.sigmoid(h)                                    # SiLU (lane-dense)

    # --- Layer 2: o^T = W2^T @ h^T + b2, SiLU, taper — all lane-dense ---------
    o = jnp.dot(w2T_ref[...], h, preferred_element_type=jnp.float32)  # (O, T)
    o = o + b2_ref[...]
    o = o * jax.nn.sigmoid(o)                                    # SiLU
    o = o * taper                                                # (O, T)

    # Single in-kernel transpose right before the store: writes land directly
    # in the caller's (E, O) layout — no post-kernel HBM transpose pass.
    out_ref[...] = jnp.transpose(o).astype(out_ref.dtype)        # (T, O)


def pair_basis(dist, edge_features, w1, b1, w2, b2, *, cutoff, tile_e=8192):
    """dist: (E,) f32, edge_features: (E, F) f32 -> (E, O) f32."""
    E = dist.shape[0]
    F = edge_features.shape[1]
    H = w1.shape[1]
    O = w2.shape[1]

    # Free metadata reshape + tiny weight re-layouts only (a few KiB, one-off);
    # the big per-edge streams are passed through untouched.
    d_row = dist[None, :]            # (1, E)
    w1d = w1[0][:, None]             # (H, 1)  distance column of layer 1
    w1eT = w1[1:].T                  # (H, F)  feature block of layer 1, transposed
    b1c = b1[:, None]                # (H, 1)
    w2T = w2.T                       # (O, H)
    b2c = b2[:, None]                # (O, 1)

    # Tile the edge axis.  Large tiles amortize the ~0.35 us/step overhead; the
    # clamp keeps >= 4 grid steps when possible (v7x: 2 TensorCores x >= 2
    # steps each for pipelining).  No padding: grid = cdiv, Pallas handles the
    # partial last block (lanes are independent; OOB rows are dropped on
    # writeback and never feed a cross-lane reduction).
    tile_e = max(128, _round_up(min(int(tile_e), 16384), 128))
    tile = min(tile_e, max(128, _round_up(pl.cdiv(E, 4), 128)))
    num_tiles = pl.cdiv(E, tile)

    # VMEM blocks for (tile, F) / (tile, O) are lane-padded to 128; size the
    # scoped VMEM limit from the double-buffered footprint, capped below v7x's
    # 64 MiB physical VMEM.
    block_bytes = 4 * tile * (8 + 128 + 128)         # d + ef + out blocks
    vmem_limit = max(16 << 20, min(2 * block_bytes + (8 << 20), 56 << 20))

    return pl.pallas_call(
        functools.partial(_pair_basis_kernel, cutoff=float(cutoff)),
        out_shape=jax.ShapeDtypeStruct((E, O), jnp.float32),
        grid_spec=pltpu.PrefetchScalarGridSpec(
            num_scalar_prefetch=0,
            grid=(num_tiles,),
            in_specs=[
                pl.BlockSpec((1, tile), lambda i: (0, i)),   # distances
                pl.BlockSpec((tile, F), lambda i: (i, 0)),   # edge features (as stored)
                pl.BlockSpec((H, 1), lambda i: (0, 0)),      # w1 (distance column)
                pl.BlockSpec((H, F), lambda i: (0, 0)),      # w1 (features)^T
                pl.BlockSpec((H, 1), lambda i: (0, 0)),      # b1
                pl.BlockSpec((O, H), lambda i: (0, 0)),      # w2^T
                pl.BlockSpec((O, 1), lambda i: (0, 0)),      # b2
            ],
            out_specs=pl.BlockSpec((tile, O), lambda i: (i, 0)),
        ),
        compiler_params=pltpu.CompilerParams(
            dimension_semantics=("parallel",),
            vmem_limit_bytes=int(vmem_limit),
        ),
    )(d_row, edge_features, w1d, w1eT, b1c, w2T, b2c)


def pair_basis_ref(dist, edge_features, w1, b1, w2, b2, *, cutoff):
    """Pure-JAX reference mirroring the PyTorch module."""
    d = dist[:, None]
    mask = d > cutoff
    s = d * (1.0 / cutoff)
    s3 = s * s * s
    s4 = s3 * s
    s5 = s4 * s
    taper = jnp.where(mask, 0.0, 1.0 - 6.0 * s5 + 15.0 * s4 - 10.0 * s3)
    inp = jnp.concatenate([d, edge_features], axis=1)
    h = inp @ w1 + b1
    h = h * jax.nn.sigmoid(h)
    o = h @ w2 + b2
    o = o * jax.nn.sigmoid(o)
    return o * taper


if __name__ == "__main__":
    edge_feature_dim = 7    # -> 1 + F = 8 input features
    hidden_dim = 32
    output_dim = 16
    cutoff = 5.0

    key = jax.random.PRNGKey(0)
    k_d, k_ef, k_w1, k_b1, k_w2, k_b2 = jax.random.split(key, 6)

    in_dim = 1 + edge_feature_dim
    w1 = jax.random.normal(k_w1, (in_dim, hidden_dim), jnp.float32) * 0.2
    b1 = jax.random.normal(k_b1, (hidden_dim,), jnp.float32) * 0.1
    w2 = jax.random.normal(k_w2, (hidden_dim, output_dim), jnp.float32) * 0.2
    b2 = jax.random.normal(k_b2, (output_dim,), jnp.float32) * 0.1

    # E=250 exercises the partial-last-block (no-pad) path; E=512 runs a
    # 4-step parallel grid.
    for E in (250, 512):
        kd, kef = jax.random.split(jax.random.fold_in(k_d, E))
        dist = jax.random.uniform(kd, (E,), jnp.float32, minval=0.0, maxval=8.0)
        edge_features = jax.random.normal(kef, (E, edge_feature_dim), jnp.float32)

        out = pair_basis(dist, edge_features, w1, b1, w2, b2, cutoff=cutoff)
        out = jax.block_until_ready(out)

        ref = pair_basis_ref(dist, edge_features, w1, b1, w2, b2, cutoff=cutoff)
        assert out.shape == (E, output_dim)
        assert jnp.allclose(out, ref, atol=1e-4, rtol=1e-4), f"mismatch vs reference (E={E})"

    print("KERNEL_OK")
</pallas_src>

<mosaic_0001>
module attributes {stable_mosaic.version = 11 : i64} {
  func.func @_pair_basis_kernel(%arg0: i32, %arg1: memref<1x128xf32, #tpu.memory_space<vmem>>, %arg2: memref<128x7xf32, #tpu.memory_space<vmem>>, %arg3: memref<32x1xf32, #tpu.memory_space<vmem>>, %arg4: memref<32x7xf32, #tpu.memory_space<vmem>>, %arg5: memref<32x1xf32, #tpu.memory_space<vmem>>, %arg6: memref<16x32xf32, #tpu.memory_space<vmem>>, %arg7: memref<16x1xf32, #tpu.memory_space<vmem>>, %arg8: memref<128x16xf32, #tpu.memory_space<vmem>>) attributes {dimension_semantics = [#tpu.dimension_semantics<parallel>], iteration_bounds = array<i64: 2>, scalar_prefetch = 0 : i64, scratch_operands = 0 : i64, tpu.core_type = #tpu.core_type<tc>, window_params = [{transform_indices = @transform_0, window_bounds = array<i64: 1, 128>}, {transform_indices = @transform_1, window_bounds = array<i64: 128, 7>}, {pipeline_mode = #tpu.pipeline_mode<synchronous>, transform_indices = @transform_2, window_bounds = array<i64: 32, 1>}, {pipeline_mode = #tpu.pipeline_mode<synchronous>, transform_indices = @transform_3, window_bounds = array<i64: 32, 7>}, {pipeline_mode = #tpu.pipeline_mode<synchronous>, transform_indices = @transform_4, window_bounds = array<i64: 32, 1>}, {pipeline_mode = #tpu.pipeline_mode<synchronous>, transform_indices = @transform_5, window_bounds = array<i64: 16, 32>}, {pipeline_mode = #tpu.pipeline_mode<synchronous>, transform_indices = @transform_6, window_bounds = array<i64: 16, 1>}, {transform_indices = @transform_7, window_bounds = array<i64: 128, 16>}]} {
    %c0 = arith.constant 0 : index
    %c0_0 = arith.constant 0 : index
    %0 = vector.load %arg1[%c0, %c0_0] : memref<1x128xf32, #tpu.memory_space<vmem>>, vector<1x128xf32>
    %cst = arith.constant 2.000000e-01 : f32
    %1 = vector.broadcast %cst : f32 to vector<1x128xf32>
    %2 = arith.mulf %0, %1 : vector<1x128xf32>
    %3 = arith.mulf %2, %2 : vector<1x128xf32>
    %4 = arith.mulf %3, %2 : vector<1x128xf32>
    %cst_1 = arith.constant 6.000000e+00 : f32
    %5 = vector.broadcast %cst_1 : f32 to vector<1x128xf32>
    %6 = arith.mulf %5, %2 : vector<1x128xf32>
    %cst_2 = arith.constant -1.500000e+01 : f32
    %7 = vector.broadcast %cst_2 : f32 to vector<1x128xf32>
    %8 = arith.addf %7, %6 : vector<1x128xf32>
    %9 = arith.mulf %2, %8 : vector<1x128xf32>
    %cst_3 = arith.constant 1.000000e+01 : f32
    %10 = vector.broadcast %cst_3 : f32 to vector<1x128xf32>
    %11 = arith.addf %10, %9 : vector<1x128xf32>
    %12 = arith.mulf %4, %11 : vector<1x128xf32>
    %cst_4 = arith.constant 1.000000e+00 : f32
    %13 = vector.broadcast %cst_4 : f32 to vector<1x128xf32>
    %14 = arith.subf %13, %12 : vector<1x128xf32>
    %cst_5 = arith.constant 5.000000e+00 : f32
    %15 = vector.broadcast %cst_5 : f32 to vector<1x128xf32>
    %16 = arith.cmpf ogt, %0, %15 : vector<1x128xf32>
    %cst_6 = arith.constant 0.000000e+00 : f32
    %17 = vector.broadcast %cst_6 : f32 to vector<1x128xf32>
    %18 = arith.select %16, %17, %14 : vector<1x128xi1>, vector<1x128xf32>
    %c0_7 = arith.constant 0 : index
    %c0_8 = arith.constant 0 : index
    %19 = vector.load %arg4[%c0_7, %c0_8] : memref<32x7xf32, #tpu.memory_space<vmem>>, vector<32x7xf32>
    %c0_9 = arith.constant 0 : index
    %c0_10 = arith.constant 0 : index
    %20 = vector.load %arg2[%c0_9, %c0_10] : memref<128x7xf32, #tpu.memory_space<vmem>>, vector<128x7xf32>
    %cst_11 = arith.constant dense<0.000000e+00> : vector<32x128xf32>
    %21 = tpu.matmul %19, %20, %cst_11 {dimension_numbers = #tpu.dot_dimension_numbers<[1], [1], [0], [0], [0, 0, 1, 0], [], []>} : vector<32x7xf32>, vector<128x7xf32>, vector<32x128xf32> -> vector<32x128xf32>
    %c0_12 = arith.constant 0 : index
    %c0_13 = arith.constant 0 : index
    %22 = vector.load %arg3[%c0_12, %c0_13] : memref<32x1xf32, #tpu.memory_space<vmem>>, vector<32x1xf32>
    %23 = vector.broadcast %22 : vector<32x1xf32> to vector<32x128xf32>
    %24 = vector.broadcast %0 : vector<1x128xf32> to vector<32x128xf32>
    %25 = arith.mulf %23, %24 : vector<32x128xf32>
    %26 = arith.addf %21, %25 : vector<32x128xf32>
    %c0_14 = arith.constant 0 : index
    %c0_15 = arith.constant 0 : index
    %27 = vector.load %arg5[%c0_14, %c0_15] : memref<32x1xf32, #tpu.memory_space<vmem>>, vector<32x1xf32>
    %28 = vector.broadcast %27 : vector<32x1xf32> to vector<32x128xf32>
    %29 = arith.addf %26, %28 : vector<32x128xf32>
    %30 = arith.negf %29 : vector<32x128xf32>
    %31 = math.exp %30 : vector<32x128xf32>
    %cst_16 = arith.constant 1.000000e+00 : f32
    %32 = vector.broadcast %cst_16 : f32 to vector<32x128xf32>
    %33 = arith.addf %32, %31 : vector<32x128xf32>
    %34 = arith.divf %32, %33 : vector<32x128xf32>
    %35 = arith.mulf %29, %34 : vector<32x128xf32>
    %c0_17 = arith.constant 0 : index
    %c0_18 = arith.constant 0 : index
    %36 = vector.load %arg6[%c0_17, %c0_18] : memref<16x32xf32, #tpu.memory_space<vmem>>, vector<16x32xf32>
    %cst_19 = arith.constant dense<0.000000e+00> : vector<16x128xf32>
    %37 = tpu.matmul %36, %35, %cst_19 {dimension_numbers = #tpu.dot_dimension_numbers<[1], [0], [0], [1], [0, 0, 1, 1], [], []>} : vector<16x32xf32>, vector<32x128xf32>, vector<16x128xf32> -> vector<16x128xf32>
    %c0_20 = arith.constant 0 : index
    %c0_21 = arith.constant 0 : index
    %38 = vector.load %arg7[%c0_20, %c0_21] : memref<16x1xf32, #tpu.memory_space<vmem>>, vector<16x1xf32>
    %39 = vector.broadcast %38 : vector<16x1xf32> to vector<16x128xf32>
    %40 = arith.addf %37, %39 : vector<16x128xf32>
    %41 = arith.negf %40 : vector<16x128xf32>
    %42 = math.exp %41 : vector<16x128xf32>
    %cst_22 = arith.constant 1.000000e+00 : f32
    %43 = vector.broadcast %cst_22 : f32 to vector<16x128xf32>
    %44 = arith.addf %43, %42 : vector<16x128xf32>
    %45 = arith.divf %43, %44 : vector<16x128xf32>
    %46 = arith.mulf %40, %45 : vector<16x128xf32>
    %47 = vector.broadcast %18 : vector<1x128xf32> to vector<16x128xf32>
    %48 = arith.mulf %46, %47 : vector<16x128xf32>
    %49 = tpu.transpose %48, [1, 0] : vector<16x128xf32> -> vector<128x16xf32>
    %c0_23 = arith.constant 0 : index
    %c0_24 = arith.constant 0 : index
    %50 = vector.load %arg8[%c0_23, %c0_24] : memref<128x16xf32, #tpu.memory_space<vmem>>, vector<128x16xf32>
    tpu.vector_store %arg8[%c0_23, %c0_24], %49 {strides = array<i32>} : memref<128x16xf32, #tpu.memory_space<vmem>>, vector<128x16xf32>,
    return
  }
  func.func @transform_0(%arg0: i32) -> (i32, i32) {
    %c0_i32 = arith.constant 0 : i32
    %c0_i32_0 = arith.constant 0 : i32
    return %c0_i32, %arg0 : i32, i32
  }
  func.func @transform_1(%arg0: i32) -> (i32, i32) {
    %c0_i32 = arith.constant 0 : i32
    %c0_i32_0 = arith.constant 0 : i32
    return %arg0, %c0_i32 : i32, i32
  }
  func.func @transform_2(%arg0: i32) -> (i32, i32) {
    %c0_i32 = arith.constant 0 : i32
    %c0_i32_0 = arith.constant 0 : i32
    %c0_i32_1 = arith.constant 0 : i32
    return %c0_i32, %c0_i32_0 : i32, i32
  }
  func.func @transform_3(%arg0: i32) -> (i32, i32) {
    %c0_i32 = arith.constant 0 : i32
    %c0_i32_0 = arith.constant 0 : i32
    %c0_i32_1 = arith.constant 0 : i32
    return %c0_i32, %c0_i32_0 : i32, i32
  }
  func.func @transform_4(%arg0: i32) -> (i32, i32) {
    %c0_i32 = arith.constant 0 : i32
    %c0_i32_0 = arith.constant 0 : i32
    %c0_i32_1 = arith.constant 0 : i32
    return %c0_i32, %c0_i32_0 : i32, i32
  }
  func.func @transform_5(%arg0: i32) -> (i32, i32) {
    %c0_i32 = arith.constant 0 : i32
    %c0_i32_0 = arith.constant 0 : i32
    %c0_i32_1 = arith.constant 0 : i32
    return %c0_i32, %c0_i32_0 : i32, i32
  }
  func.func @transform_6(%arg0: i32) -> (i32, i32) {
    %c0_i32 = arith.constant 0 : i32
    %c0_i32_0 = arith.constant 0 : i32
    %c0_i32_1 = arith.constant 0 : i32
    return %c0_i32, %c0_i32_0 : i32, i32
  }
  func.func @transform_7(%arg0: i32) -> (i32, i32) {
    %c0_i32 = arith.constant 0 : i32
    %c0_i32_0 = arith.constant 0 : i32
    return %arg0, %c0_i32 : i32, i32
  }
}

</mosaic_0001>

<llo_original>
// kernel: tpu_custom_call.1
$region0: #{tpu_custom_call.1}
  #allocation0 [shape = 'u32[]', space=smem, size = 0x4, offset = 0x4, fixed_abs, tag = 'smem constant byte address 0x4 - core index']
  #allocation1 [shape = 'u32[144,128]{1,0:T(1,128)}', space=vmem, size = 0x12000, scoped, tag = 'internal scratch']
  %s0 = inlined_call_operand.vmem [shape: f32[1,250], index: 0, kind: input, shape index: {}]
  %s1 = inlined_call_operand.vmem [shape: f32[250,7], index: 1, kind: input, shape index: {}]
  %s2 = inlined_call_operand.vmem [shape: f32[32,1], index: 2, kind: input, shape index: {}]
  %s3 = inlined_call_operand.vmem [shape: f32[32,7], index: 3, kind: input, shape index: {}]
  %s4 = inlined_call_operand.vmem [shape: f32[32,1], index: 4, kind: input, shape index: {}]
  %s5 = inlined_call_operand.vmem [shape: f32[16,32], index: 5, kind: input, shape index: {}]
  %s6 = inlined_call_operand.vmem [shape: f32[16,1], index: 6, kind: input, shape index: {}]
  %s7 = inlined_call_operand.vmem [shape: f32[250,16], index: 7, kind: output, shape index: {}]
  %s8 = sld [smem:[#allocation0]]
  $region61: #{tpu_custom_call.1} parent=0
    _
  %s10 = ssub.s32 1, %s8
  %s11 = scalar_select 0, %s10, %s8
  loop: start=0, step=1, limit=4
  $region2: #{tpu_custom_call.1} parent=0 // loop_pre_header
    _
  $region3: #{tpu_custom_call.1} parent=0 // loop_header
    %s13 = sphi 0, %s17
    %p14 = scmp.ge.s32.totalorder %s13, 4
    %s23 = sphi 0, %s25
    %s26 = sphi 0, %s23
    %s27 = sphi 0, %s26
    %s43 = sphi 0, %s27
    %s49 = sphi 0, %s51
    %s52 = sphi 0, %s49
    %s53 = sphi 0, %s52
    %s69 = sphi 0, %s53
    %s73 = sphi 0, %s73
    %s75 = sphi 0, %s73
    %s76 = sphi 0, %s75
    %s90 = sphi 0, %s76
    %s94 = sphi 0, %s94
    %s96 = sphi 0, %s94
    %s97 = sphi 0, %s96
    %s111 = sphi 0, %s97
    %s115 = sphi 0, %s115
    %s117 = sphi 0, %s115
    %s118 = sphi 0, %s117
    %s132 = sphi 0, %s118
    %s136 = sphi 0, %s136
    %s138 = sphi 0, %s136
    %s139 = sphi 0, %s138
    %s153 = sphi 0, %s139
    %s157 = sphi 0, %s157
    %s159 = sphi 0, %s157
    %s160 = sphi 0, %s159
    %s174 = sphi 0, %s160
    %s180 = sphi 0, %s182
    %s183 = sphi 0, %s180
    %s184 = sphi 0, %s183
    %s200 = sphi 0, %s184
  $region4: #{tpu_custom_call.1} parent=0 // loop_header_branch
    %16 = sbr.rel (%p14) target = $region8
  $region5: #{tpu_custom_call.1} parent=0 // loop_body
    %s18 = ssub.s32 %s13, 1
    %s19 = ssub.s32 %s13, 2
    %s20 = sadd.s32 %s13, 1
    %s21 = ssub.s32 %s13, %s20
    %p22 = scmp.eq.s32.totalorder %s21, 0
    %s24 = sadd.s32 %s23, 1
    %s25 = scalar_select %p22, %s23, %s24
    %p28 = pneg %p22
    %p29 = scmp.eq.s32.totalorder %s13, 1
    %p30 = por %p28, %p29
    %p31 = scmp.ne.s32.totalorder %s23, %s26
    %p32 = scmp.eq.s32.totalorder %s13, 0
    %p33 = por %p31, %p32
    %p34 = scmp.ne.s32.totalorder %s23, %s26
    %p35 = scmp.eq.s32.totalorder %s18, 1
    %p36 = por %p34, %p35
    %p37 = scmp.ne.s32.totalorder %s26, %s27
    %p38 = scmp.eq.s32.totalorder %s18, 0
    %p39 = por %p37, %p38
    %p40 = scmp.ne.s32.totalorder %s26, %s27
    %p41 = scmp.eq.s32.totalorder %s19, 1
    %p42 = por %p40, %p41
    %p44 = scmp.ne.s32.totalorder %s27, %s43
    %p45 = scmp.eq.s32.totalorder %s19, 0
    %p46 = por %p44, %p45
    %s47 = ssub.s32 %s13, %s20
    %p48 = scmp.eq.s32.totalorder %s47, 0
    %s50 = sadd.s32 %s49, 1
    %s51 = scalar_select %p48, %s49, %s50
    %p54 = pneg %p48
    %p55 = scmp.eq.s32.totalorder %s13, 1
    %p56 = por %p54, %p55
    %p57 = scmp.ne.s32.totalorder %s49, %s52
    %p58 = scmp.eq.s32.totalorder %s13, 0
    %p59 = por %p57, %p58
    %p60 = scmp.ne.s32.totalorder %s49, %s52
    %p61 = scmp.eq.s32.totalorder %s18, 1
    %p62 = por %p60, %p61
    %p63 = scmp.ne.s32.totalorder %s52, %s53
    %p64 = scmp.eq.s32.totalorder %s18, 0
    %p65 = por %p63, %p64
    %p66 = scmp.ne.s32.totalorder %s52, %s53
    %p67 = scmp.eq.s32.totalorder %s19, 1
    %p68 = por %p66, %p67
    %p70 = scmp.ne.s32.totalorder %s53, %s69
    %p71 = scmp.eq.s32.totalorder %s19, 0
    %p72 = por %p70, %p71
    %s74 = sadd.s32 %s73, 1
    %p77 = scmp.eq.s32.totalorder %s13, 1
    %p78 = scmp.ne.s32.totalorder %s73, %s75
    %p79 = scmp.eq.s32.totalorder %s13, 0
    %p80 = por %p78, %p79
    %p81 = scmp.ne.s32.totalorder %s73, %s75
    %p82 = scmp.eq.s32.totalorder %s18, 1
    %p83 = por %p81, %p82
    %p84 = scmp.ne.s32.totalorder %s75, %s76
    %p85 = scmp.eq.s32.totalorder %s18, 0
    %p86 = por %p84, %p85
    %p87 = scmp.ne.s32.totalorder %s75, %s76
    %p88 = scmp.eq.s32.totalorder %s19, 1
    %p89 = por %p87, %p88
    %p91 = scmp.ne.s32.totalorder %s76, %s90
    %p92 = scmp.eq.s32.totalorder %s19, 0
    %p93 = por %p91, %p92
    %s95 = sadd.s32 %s94, 1
    %p98 = scmp.eq.s32.totalorder %s13, 1
    %p99 = scmp.ne.s32.totalorder %s94, %s96
    %p100 = scmp.eq.s32.totalorder %s13, 0
    %p101 = por %p99, %p100
    %p102 = scmp.ne.s32.totalorder %s94, %s96
    %p103 = scmp.eq.s32.totalorder %s18, 1
    %p104 = por %p102, %p103
    %p105 = scmp.ne.s32.totalorder %s96, %s97
    %p106 = scmp.eq.s32.totalorder %s18, 0
    %p107 = por %p105, %p106
    %p108 = scmp.ne.s32.totalorder %s96, %s97
    %p109 = scmp.eq.s32.totalorder %s19, 1
    %p110 = por %p108, %p109
    %p112 = scmp.ne.s32.totalorder %s97, %s111
    %p113 = scmp.eq.s32.totalorder %s19, 0
    %p114 = por %p112, %p113
    %s116 = sadd.s32 %s115, 1
    %p119 = scmp.eq.s32.totalorder %s13, 1
    %p120 = scmp.ne.s32.totalorder %s115, %s117
    %p121 = scmp.eq.s32.totalorder %s13, 0
    %p122 = por %p120, %p121
    %p123 = scmp.ne.s32.totalorder %s115, %s117
    %p124 = scmp.eq.s32.totalorder %s18, 1
    %p125 = por %p123, %p124
    %p126 = scmp.ne.s32.totalorder %s117, %s118
    %p127 = scmp.eq.s32.totalorder %s18, 0
    %p128 = por %p126, %p127
    %p129 = scmp.ne.s32.totalorder %s117, %s118
    %p130 = scmp.eq.s32.totalorder %s19, 1
    %p131 = por %p129, %p130
    %p133 = scmp.ne.s32.totalorder %s118, %s132
    %p134 = scmp.eq.s32.totalorder %s19, 0
    %p135 = por %p133, %p134
    %s137 = sadd.s32 %s136, 1
    %p140 = scmp.eq.s32.totalorder %s13, 1
    %p141 = scmp.ne.s32.totalorder %s136, %s138
    %p142 = scmp.eq.s32.totalorder %s13, 0
    %p143 = por %p141, %p142
    %p144 = scmp.ne.s32.totalorder %s136, %s138
    %p145 = scmp.eq.s32.totalorder %s18, 1
    %p146 = por %p144, %p145
    %p147 = scmp.ne.s32.totalorder %s138, %s139
    %p148 = scmp.eq.s32.totalorder %s18, 0
    %p149 = por %p147, %p148
    %p150 = scmp.ne.s32.totalorder %s138, %s139
    %p151 = scmp.eq.s32.totalorder %s19, 1
    %p152 = por %p150, %p151
    %p154 = scmp.ne.s32.totalorder %s139, %s153
    %p155 = scmp.eq.s32.totalorder %s19, 0
    %p156 = por %p154, %p155
    %s158 = sadd.s32 %s157, 1
    %p161 = scmp.eq.s32.totalorder %s13, 1
    %p162 = scmp.ne.s32.totalorder %s157, %s159
    %p163 = scmp.eq.s32.totalorder %s13, 0
    %p164 = por %p162, %p163
    %p165 = scmp.ne.s32.totalorder %s157, %s159
    %p166 = scmp.eq.s32.totalorder %s18, 1
    %p167 = por %p165, %p166
    %p168 = scmp.ne.s32.totalorder %s159, %s160
    %p169 = scmp.eq.s32.totalorder %s18, 0
    %p170 = por %p168, %p169
    %p171 = scmp.ne.s32.totalorder %s159, %s160
    %p172 = scmp.eq.s32.totalorder %s19, 1
    %p173 = por %p171, %p172
    %p175 = scmp.ne.s32.totalorder %s160, %s174
    %p176 = scmp.eq.s32.totalorder %s19, 0
    %p177 = por %p175, %p176
    %s178 = ssub.s32 %s13, %s20
    %p179 = scmp.eq.s32.totalorder %s178, 0
    %s181 = sadd.s32 %s180, 1
    %s182 = scalar_select %p179, %s180, %s181
    %p185 = pneg %p179
    %p186 = scmp.eq.s32.totalorder %s13, 1
    %p187 = por %p185, %p186
    %p188 = scmp.ne.s32.totalorder %s180, %s183
    %p189 = scmp.eq.s32.totalorder %s13, 0
    %p190 = por %p188, %p189
    %p191 = scmp.ne.s32.totalorder %s180, %s183
    %p192 = scmp.eq.s32.totalorder %s18, 1
    %p193 = por %p191, %p192
    %p194 = scmp.ne.s32.totalorder %s183, %s184
    %p195 = scmp.eq.s32.totalorder %s18, 0
    %p196 = por %p194, %p195
    %p197 = scmp.ne.s32.totalorder %s183, %s184
    %p198 = scmp.eq.s32.totalorder %s19, 1
    %p199 = por %p197, %p198
    %p201 = scmp.ne.s32.totalorder %s184, %s200
    %p202 = scmp.eq.s32.totalorder %s19, 0
    %p203 = por %p201, %p202
    %p204 = scmp.le.s32.totalorder 1, %s13
    %p205 = scmp.lt.s32.totalorder %s13, 3
    %p206 = pnand %p204, %p205
    %p207 = pneg %p206
    // Predicated region
    $region9: #{tpu_custom_call.1} parent=5 // pred_check
      _
    $region10: #{tpu_custom_call.1} parent=5 // pred_check_branch
      %209 = sbr.rel (%p206) target = $region12
    $region11: #{tpu_custom_call.1} parent=5 // pred_region
      %s210 = ssub.s32 %s13, 1
      // Predicated region
      $region13: #{tpu_custom_call.1} parent=11 // pred_check
        %p211 = pneg %p86
      $region14: #{tpu_custom_call.1} parent=11 // pred_check_branch
        %213 = sbr.rel (%p211) target = $region16
      $region15: #{tpu_custom_call.1} parent=11 // pred_region
        _
      $region16: #{tpu_custom_call.1} parent=11 // pred_fallthru
        _
      // Predicated region
      $region17: #{tpu_custom_call.1} parent=11 // pred_check
        %p214 = pneg %p107
      $region18: #{tpu_custom_call.1} parent=11 // pred_check_branch
        %216 = sbr.rel (%p214) target = $region20
      $region19: #{tpu_custom_call.1} parent=11 // pred_region
        _
      $region20: #{tpu_custom_call.1} parent=11 // pred_fallthru
        _
      // Predicated region
      $region21: #{tpu_custom_call.1} parent=11 // pred_check
        %p217 = pneg %p128
      $region22: #{tpu_custom_call.1} parent=11 // pred_check_branch
        %219 = sbr.rel (%p217) target = $region24
      $region23: #{tpu_custom_call.1} parent=11 // pred_region
        _
      $region24: #{tpu_custom_call.1} parent=11 // pred_fallthru
        _
      // Predicated region
      $region25: #{tpu_custom_call.1} parent=11 // pred_check
        %p220 = pneg %p149
      $region26: #{tpu_custom_call.1} parent=11 // pred_check_branch
        %222 = sbr.rel (%p220) target = $region28
      $region27: #{tpu_custom_call.1} parent=11 // pred_region
        _
      $region28: #{tpu_custom_call.1} parent=11 // pred_fallthru
        _
      // Predicated region
      $region29: #{tpu_custom_call.1} parent=11 // pred_check
        %p223 = pneg %p170
      $region30: #{tpu_custom_call.1} parent=11 // pred_check_branch
        %225 = sbr.rel (%p223) target = $region32
      $region31: #{tpu_custom_call.1} parent=11 // pred_region
        _
      $region32: #{tpu_custom_call.1} parent=11 // pred_fallthru
        _
    $region12: #{tpu_custom_call.1} parent=5 // pred_fallthru
      _
    %p226 = scmp.lt.s32.totalorder %s13, 2
    // Predicated region
    $region33: #{tpu_custom_call.1} parent=5 // pred_check
      %p227 = pneg %p226
    $region34: #{tpu_custom_call.1} parent=5 // pred_check_branch
      %229 = sbr.rel (%p227) target = $region36
    $region35: #{tpu_custom_call.1} parent=5 // pred_region
      // Predicated region
      $region37: #{tpu_custom_call.1} parent=35 // pred_check
        %p230 = pneg %p33
      $region38: #{tpu_custom_call.1} parent=35 // pred_check_branch
        %232 = sbr.rel (%p230) target = $region40
      $region39: #{tpu_custom_call.1} parent=35 // pred_region
        %p233 = scmp.lt.s32.totalorder %s13, 1
        %s234 = scalar_select %p233, %s13, 1
        %s235 = scalar_lea.vmem %s0, %s234
      $region40: #{tpu_custom_call.1} parent=35 // pred_fallthru
        _
      // Predicated region
      $region41: #{tpu_custom_call.1} parent=35 // pred_check
        %p236 = pneg %p59
      $region42: #{tpu_custom_call.1} parent=35 // pred_check_branch
        %238 = sbr.rel (%p236) target = $region44
      $region43: #{tpu_custom_call.1} parent=35 // pred_region
        %s239 = smul.u32 16, %s13
        %p240 = scmp.lt.s32.totalorder %s239, 31
        %s241 = scalar_select %p240, %s239, 31
        %s242 = smul.addr %s241, 8
        %s243 = scalar_lea.vmem %s1, %s242
        %s244 = smul.u32 16, %s13
      $region44: #{tpu_custom_call.1} parent=35 // pred_fallthru
        _
    $region36: #{tpu_custom_call.1} parent=5 // pred_fallthru
      _
    %p245 = scmp.le.s32.totalorder 1, %s13
    %p246 = scmp.lt.s32.totalorder %s13, 3
    %p247 = pnand %p245, %p246
    %p248 = pneg %p247
    // Predicated region
    $region45: #{tpu_custom_call.1} parent=5 // pred_check
      _
    $region46: #{tpu_custom_call.1} parent=5 // pred_check_branch
      %250 = sbr.rel (%p247) target = $region48
    $region47: #{tpu_custom_call.1} parent=5 // pred_region
      %s251 = ssub.s32 %s13, 1
      %p252 = scmp.lt.s32.totalorder %s18, 1
      %s253 = scalar_select %p252, %s18, 1
      %s254 = scalar_lea.vmem %s0, %s253
      %p255 = pneg %p39
      %p256 = pneg %p36
      %s257 = smul.u32 16, %s18
      %p258 = scmp.lt.s32.totalorder %s257, 31
      %s259 = scalar_select %p258, %s257, 31
      %s260 = smul.addr %s259, 8
      %s261 = scalar_lea.vmem %s1, %s260
      %p262 = pneg %p65
      %p263 = pneg %p62
      %p264 = pneg %p86
      %p265 = pneg %p83
      %p266 = pneg %p107
      %p267 = pneg %p104
      %p268 = pneg %p128
      %p269 = pneg %p125
      %p270 = pneg %p149
      %p271 = pneg %p146
      %p272 = pneg %p170
      %p273 = pneg %p167
      %p274 = pneg %p196
      %p275 = pneg %p193
      %s276 = smul.u32 16, %s18
      %p277 = scmp.lt.s32.totalorder %s276, 31
      %s278 = scalar_select %p277, %s276, 31
      %s279 = smul.addr %s278, 8
      %s280 = scalar_lea.vmem %s7, %s279
      %p281 = scmp.lt.s32.totalorder %s18, 1
      %s282 = scalar_select %p281, %s18, 1
      %s283 = scalar_lea.vmem %s0, %s282
      %s284 = smul.u32 16, %s18
      %p285 = scmp.lt.s32.totalorder %s284, 31
      %s286 = scalar_select %p285, %s284, 31
      %s287 = smul.addr %s286, 8
      %s288 = scalar_lea.vmem %s1, %s287
      %s289 = smul.u32 16, %s18
      %s290 = smul.u32 16, %s18
      %p291 = scmp.lt.s32.totalorder %s290, 31
      %s292 = scalar_select %p291, %s290, 31
      %s293 = smul.addr %s292, 8
      %s294 = scalar_lea.vmem %s7, %s293
      %s295 = smul.u32 16, %s18
      %v296 = vld [vmem:[%s283] sm:$0x1]
      %v297 = vmul.f32 %v296, 0.2
      %v298 = vmul.f32 %v297, %v297
      %v299 = vmul.f32 %v298, %v297
      %v300 = vmul.f32 %v297, 6.0
      %v301 = vadd.f32 %v300, -15.0
      %v302 = vmul.f32 %v297, %v301
      %v303 = vadd.f32 %v302, 10.0
      %v304 = vmul.f32 %v299, %v303
      %v305 = vsub.f32 1.0, %v304
      %vm306 = vcmp.gt.f32.partialorder %v296, 5.0
      %v307 = vsel %vm306, 0.0, %v305
      %v308 = vld [vmem:[%s3] sm:$0xff]
      %v309 = vld [vmem:[%s3 + $0x8] sm:$0xff]
      %v310 = vld [vmem:[%s3 + $0x10] sm:$0xff]
      %v311 = vld [vmem:[%s3 + $0x18] sm:$0xff]
      %v312 = vld [vmem:[%s288] sm:$0xff]
      %v313 = vld [vmem:[%s288 + $0x8] sm:$0xff]
      %v314 = vld [vmem:[%s288 + $0x10] sm:$0xff]
      %v315 = vld [vmem:[%s288 + $0x18] sm:$0xff]
      %v316 = vld [vmem:[%s288 + $0x20] sm:$0xff]
      %v317 = vld [vmem:[%s288 + $0x28] sm:$0xff]
      %v318 = vld [vmem:[%s288 + $0x30] sm:$0xff]
      %v319 = vld [vmem:[%s288 + $0x38] sm:$0xff]
      %v320 = vld [vmem:[%s288 + $0x40] sm:$0xff]
      %v321 = vld [vmem:[%s288 + $0x48] sm:$0xff]
      %v322 = vld [vmem:[%s288 + $0x50] sm:$0xff]
      %v323 = vld [vmem:[%s288 + $0x58] sm:$0xff]
      %v324 = vld [vmem:[%s288 + $0x60] sm:$0xff]
      %v325 = vld [vmem:[%s288 + $0x68] sm:$0xff]
      %v326 = vld [vmem:[%s288 + $0x70] sm:$0xff]
      %v327 = vld [vmem:[%s288 + $0x78] sm:$0xff]
      %v328 = vld [vmem:[%s2] sm:$0xff]
      %v329 = vld [vmem:[%s2 + $0x8] sm:$0xff]
      %v330 = vld [vmem:[%s2 + $0x10] sm:$0xff]
      %v331 = vld [vmem:[%s2 + $0x18] sm:$0xff]
      %333 = vset.pattern.permute.xlu0 0
      %334 = vperm.xlu0 %333, %v328
      %v335 = vpop.permute.xlu0 %334
      %338 = vset.pattern.permute.xlu0 0
      %339 = vperm.xlu0 %338, %v329
      %v340 = vpop.permute.xlu0 %339
      %343 = vset.pattern.permute.xlu0 0
      %344 = vperm.xlu0 %343, %v330
      %v345 = vpop.permute.xlu0 %344
      %348 = vset.pattern.permute.xlu0 0
      %349 = vperm.xlu0 %348, %v331
      %v350 = vpop.permute.xlu0 %349
      %v353 = vlaneseq
      %v354 = vshrl.u32 %v353, 7
      %v355 = vsub.s32 0, %v354
      %v356 = vrot.slane %v296, %v355
      %v358 = vmul.f32 %v335, %v356
      %v359 = vmul.f32 %v340, %v356
      %v360 = vmul.f32 %v345, %v356
      %v361 = vmul.f32 %v350, %v356
      %vm362 = vcmask 56320
      %v364 = vsel %vm362, %v308, 0
      %v367 = vsel %vm362, %v309, 0
      %v370 = vsel %vm362, %v310, 0
      %v373 = vsel %vm362, %v311, 0
      %v376 = vsel %vm362, %v312, 0
      %v379 = vsel %vm362, %v313, 0
      %v382 = vsel %vm362, %v314, 0
      %v385 = vsel %vm362, %v315, 0
      %v388 = vsel %vm362, %v316, 0
      %v391 = vsel %vm362, %v317, 0
      %v394 = vsel %vm362, %v318, 0
      %v397 = vsel %vm362, %v319, 0
      %v400 = vsel %vm362, %v320, 0
      %v403 = vsel %vm362, %v321, 0
      %v406 = vsel %vm362, %v322, 0
      %v409 = vsel %vm362, %v323, 0
      %v412 = vsel %vm362, %v324, 0
      %v415 = vsel %vm362, %v325, 0
      %v418 = vsel %vm362, %v326, 0
      %v421 = vsel %vm362, %v327, 0
      %423 = vmatprep.subr.mxu0 0.0
      %424 = vmatpush1.xpose.msra.mxu0 %v421
      %425 = vmatprep.subr.mxu0 0.0
      %426 = vmatpush1.xpose.msra.mxu0 %v418
      %427 = vmatprep.subr.mxu0 0.0
      %428 = vmatpush1.xpose.msra.mxu0 %v415
      %429 = vmatprep.subr.mxu0 0.0
      %430 = vmatpush1.xpose.msra.mxu0 %v412
      %431 = vmatprep.subr.mxu0 0.0
      %432 = vmatpush1.xpose.msra.mxu0 %v409
      %433 = vmatprep.subr.mxu0 0.0
      %434 = vmatpush1.xpose.msra.mxu0 %v406
      %435 = vmatprep.subr.mxu0 0.0
      %436 = vmatpush1.xpose.msra.mxu0 %v403
      %437 = vmatprep.subr.mxu0 0.0
      %438 = vmatpush1.xpose.msra.mxu0 %v400
      %439 = vmatprep.subr.mxu0 0.0
      %440 = vmatpush1.xpose.msra.mxu0 %v397
      %441 = vmatprep.subr.mxu0 0.0
      %442 = vmatpush1.xpose.msra.mxu0 %v394
      %443 = vmatprep.subr.mxu0 0.0
      %444 = vmatpush1.xpose.msra.mxu0 %v391
      %445 = vmatprep.subr.mxu0 0.0
      %446 = vmatpush1.xpose.msra.mxu0 %v388
      %447 = vmatprep.subr.mxu0 0.0
      %448 = vmatpush1.xpose.msra.mxu0 %v385
      %449 = vmatprep.subr.mxu0 0.0
      %450 = vmatpush1.xpose.msra.mxu0 %v382
      %451 = vmatprep.subr.mxu0 0.0
      %452 = vmatpush1.xpose.msra.mxu0 %v379
      %453 = vmatprep.subr.mxu0 0.0
      %454 = vmatpush1.xpose.msra.mxu0 %v376
      %455 = vmatprep.subr.mxu0 0.0
      %456 = vmatpush2.xpose.msra.mxu0 0.0
      %457 = vmatprep.subr.mxu0 0.0
      %458 = vmatpush2.xpose.msra.mxu0 0.0
      %459 = vmatprep.subr.mxu0 0.0
      %460 = vmatpush2.xpose.msra.mxu0 0.0
      %461 = vmatprep.subr.mxu0 0.0
      %462 = vmatpush2.xpose.msra.mxu0 0.0
      %463 = vmatprep.subr.mxu0 0.0
      %464 = vmatpush2.xpose.msra.mxu0 0.0
      %465 = vmatprep.subr.mxu0 0.0
      %466 = vmatpush2.xpose.msra.mxu0 0.0
      %467 = vmatprep.subr.mxu0 0.0
      %468 = vmatpush2.xpose.msra.mxu0 0.0
      %469 = vmatprep.subr.mxu0 0.0
      %470 = vmatpush2.xpose.msra.mxu0 0.0
      %471 = vmatprep.subr.mxu0 0.0
      %472 = vmatpush2.xpose.msra.mxu0 0.0
      %473 = vmatprep.subr.mxu0 0.0
      %474 = vmatpush2.xpose.msra.mxu0 0.0
      %475 = vmatprep.subr.mxu0 0.0
      %476 = vmatpush2.xpose.msra.mxu0 0.0
      %477 = vmatprep.subr.mxu0 0.0
      %478 = vmatpush2.xpose.msra.mxu0 0.0
      %479 = vmatprep.subr.mxu0 0.0
      %480 = vmatpush2.xpose.msra.mxu0 0.0
      %481 = vmatprep.subr.mxu0 0.0
      %482 = vmatpush2.xpose.msra.mxu0 0.0
      %483 = vmatprep.subr.mxu0 0.0
      %484 = vmatpush2.xpose.msra.mxu0 0.0
      %485 = vmatprep.subr.mxu0 0.0
      %486 = vmatpush2.xpose.msra.mxu0 0.0
      %487 = vmatprep.mubr.f32.mxu0 0.0
      %488 = vmatmul.mubr.f32.gmra.mxu0 %v364
      %v489 = vpop.f32.mrf.mxu0
      %v490 = vadd.f32 %v358, %v489
      %v491 = vpop.f32.mrf.mxu0
      %492 = vmatprep.mubr.f32.mxu0 0.0
      %493 = vmatmul.mubr.f32.gmra.mxu0 %v367
      %v494 = vpop.f32.mrf.mxu0
      %v495 = vadd.f32 %v359, %v494
      %v496 = vpop.f32.mrf.mxu0
      %497 = vmatprep.mubr.f32.mxu0 0.0
      %498 = vmatmul.mubr.f32.gmra.mxu0 %v370
      %v499 = vpop.f32.mrf.mxu0
      %v500 = vadd.f32 %v360, %v499
      %v501 = vpop.f32.mrf.mxu0
      %502 = vmatprep.mubr.f32.mxu0 0.0
      %503 = vmatmul.mubr.f32.gmra.mxu0 %v373
      %v504 = vpop.f32.mrf.mxu0
      %v505 = vadd.f32 %v361, %v504
      %v506 = vpop.f32.mrf.mxu0
      %507 = vdwg.mxu0
      %v508 = vld [vmem:[%s4] sm:$0xff]
      %v509 = vld [vmem:[%s4 + $0x8] sm:$0xff]
      %v510 = vld [vmem:[%s4 + $0x10] sm:$0xff]
      %v511 = vld [vmem:[%s4 + $0x18] sm:$0xff]
      %513 = vset.pattern.permute.xlu0 0
      %514 = vperm.xlu0 %513, %v508
      %v515 = vpop.permute.xlu0 %514
      %518 = vset.pattern.permute.xlu0 0
      %519 = vperm.xlu0 %518, %v509
      %v520 = vpop.permute.xlu0 %519
      %523 = vset.pattern.permute.xlu0 0
      %524 = vperm.xlu0 %523, %v510
      %v525 = vpop.permute.xlu0 %524
      %528 = vset.pattern.permute.xlu0 0
      %529 = vperm.xlu0 %528, %v511
      %v530 = vpop.permute.xlu0 %529
      %v532 = vadd.f32 %v490, %v515
      %v533 = vadd.f32 %v495, %v520
      %v534 = vadd.f32 %v500, %v525
      %v535 = vadd.f32 %v505, %v530
      %v536 = vxor.u32 %v532, 2147483648
      %v537 = vxor.u32 %v533, 2147483648
      %v538 = vxor.u32 %v534, 2147483648
      %v539 = vxor.u32 %v535, 2147483648
      %v540 = vmul.f32 %v536, 1.442695
      %v541 = vpow.pop %v540
      %v542 = vmul.f32 %v537, 1.442695
      %v543 = vpow.pop %v542
      %v544 = vmul.f32 %v538, 1.442695
      %v545 = vpow.pop %v544
      %v546 = vmul.f32 %v539, 1.442695
      %v547 = vpow.pop %v546
      %v548 = vadd.f32 %v541, 1.0
      %v549 = vadd.f32 %v543, 1.0
      %v550 = vadd.f32 %v545, 1.0
      %v551 = vadd.f32 %v547, 1.0
      %v552 = vrcp.pop %v548
      %v553 = vmul.f32 1.0, %v552
      %v554 = vrcp.pop %v549
      %v555 = vmul.f32 1.0, %v554
      %v556 = vrcp.pop %v550
      %v557 = vmul.f32 1.0, %v556
      %v558 = vrcp.pop %v551
      %v559 = vmul.f32 1.0, %v558
      %v560 = vmul.f32 %v532, %v553
      %v561 = vmul.f32 %v533, %v555
      %v562 = vmul.f32 %v534, %v557
      %v563 = vmul.f32 %v535, %v559
      %v564 = vld [vmem:[%s5] sm:$0xff]
      %v565 = vld [vmem:[%s5 + $0x8] sm:$0xff]
      %v566 = vld [vmem:[%s6] sm:$0xff]
      %v567 = vld [vmem:[%s6 + $0x8] sm:$0xff]
      %569 = vset.pattern.permute.xlu0 0
      %570 = vperm.xlu0 %569, %v566
      %v571 = vpop.permute.xlu0 %570
      %574 = vset.pattern.permute.xlu0 0
      %575 = vperm.xlu0 %574, %v567
      %v576 = vpop.permute.xlu0 %575
      %vm578 = vcmask 261120
      %v580 = vsel %vm578, %v564, 0
      %v583 = vsel %vm578, %v565, 0
      %585 = vmatprep.subr.mxu0 0.0
      %586 = vmatpush1.msra.mxu0 0.0
      %587 = vmatprep.subr.mxu0 0.0
      %588 = vmatpush1.msra.mxu0 0.0
      %589 = vmatprep.subr.mxu0 0.0
      %590 = vmatpush1.msra.mxu0 0.0
      %591 = vmatprep.subr.mxu0 0.0
      %592 = vmatpush1.msra.mxu0 0.0
      %593 = vmatprep.subr.mxu0 0.0
      %594 = vmatpush1.msra.mxu0 0.0
      %595 = vmatprep.subr.mxu0 0.0
      %596 = vmatpush1.msra.mxu0 0.0
      %597 = vmatprep.subr.mxu0 0.0
      %598 = vmatpush1.msra.mxu0 0.0
      %599 = vmatprep.subr.mxu0 0.0
      %600 = vmatpush1.msra.mxu0 0.0
      %601 = vmatprep.subr.mxu0 0.0
      %602 = vmatpush1.msra.mxu0 0.0
      %603 = vmatprep.subr.mxu0 0.0
      %604 = vmatpush1.msra.mxu0 0.0
      %605 = vmatprep.subr.mxu0 0.0
      %606 = vmatpush1.msra.mxu0 0.0
      %607 = vmatprep.subr.mxu0 0.0
      %608 = vmatpush1.msra.mxu0 0.0
      %609 = vmatprep.subr.mxu0 0.0
      %610 = vmatpush1.msra.mxu0 %v563
      %611 = vmatprep.subr.mxu0 0.0
      %612 = vmatpush1.msra.mxu0 %v562
      %613 = vmatprep.subr.mxu0 0.0
      %614 = vmatpush1.msra.mxu0 %v561
      %615 = vmatprep.subr.mxu0 0.0
      %616 = vmatpush1.msra.mxu0 %v560
      %617 = vmatprep.subr.mxu0 0.0
      %618 = vmatpush2.msra.mxu0 0.0
      %619 = vmatprep.subr.mxu0 0.0
      %620 = vmatpush2.msra.mxu0 0.0
      %621 = vmatprep.subr.mxu0 0.0
      %622 = vmatpush2.msra.mxu0 0.0
      %623 = vmatprep.subr.mxu0 0.0
      %624 = vmatpush2.msra.mxu0 0.0
      %625 = vmatprep.subr.mxu0 0.0
      %626 = vmatpush2.msra.mxu0 0.0
      %627 = vmatprep.subr.mxu0 0.0
      %628 = vmatpush2.msra.mxu0 0.0
      %629 = vmatprep.subr.mxu0 0.0
      %630 = vmatpush2.msra.mxu0 0.0
      %631 = vmatprep.subr.mxu0 0.0
      %632 = vmatpush2.msra.mxu0 0.0
      %633 = vmatprep.subr.mxu0 0.0
      %634 = vmatpush2.msra.mxu0 0.0
      %635 = vmatprep.subr.mxu0 0.0
      %636 = vmatpush2.msra.mxu0 0.0
      %637 = vmatprep.subr.mxu0 0.0
      %638 = vmatpush2.msra.mxu0 0.0
      %639 = vmatprep.subr.mxu0 0.0
      %640 = vmatpush2.msra.mxu0 0.0
      %641 = vmatprep.subr.mxu0 0.0
      %642 = vmatpush2.msra.mxu0 0.0
      %643 = vmatprep.subr.mxu0 0.0
      %644 = vmatpush2.msra.mxu0 0.0
      %645 = vmatprep.subr.mxu0 0.0
      %646 = vmatpush2.msra.mxu0 0.0
      %647 = vmatprep.subr.mxu0 0.0
      %648 = vmatpush2.msra.mxu0 0.0
      %649 = vmatprep.mubr.f32.mxu0 0.0
      %650 = vmatmul.mubr.f32.gmra.mxu0 %v580
      %v651 = vpop.f32.mrf.mxu0
      %v652 = vadd.f32 %v571, %v651
      %v653 = vpop.f32.mrf.mxu0
      %654 = vmatprep.mubr.f32.mxu0 0.0
      %655 = vmatmul.mubr.f32.gmra.mxu0 %v583
      %v656 = vpop.f32.mrf.mxu0
      %v657 = vadd.f32 %v576, %v656
      %v658 = vpop.f32.mrf.mxu0
      %659 = vdwg.mxu0
      %v660 = vxor.u32 %v652, 2147483648
      %v661 = vxor.u32 %v657, 2147483648
      %v662 = vmul.f32 %v660, 1.442695
      %v663 = vpow.pop %v662
      %v664 = vmul.f32 %v661, 1.442695
      %v665 = vpow.pop %v664
      %v666 = vadd.f32 %v663, 1.0
      %v667 = vadd.f32 %v665, 1.0
      %v668 = vrcp.pop %v666
      %v669 = vmul.f32 1.0, %v668
      %v670 = vrcp.pop %v667
      %v671 = vmul.f32 1.0, %v670
      %v672 = vmul.f32 %v652, %v669
      %v673 = vmul.f32 %v657, %v671
      %v675 = vlaneseq
      %v676 = vshrl.u32 %v675, 7
      %v677 = vsub.s32 0, %v676
      %v678 = vrot.slane %v307, %v677
      %v680 = vmul.f32 %v672, %v678
      %v681 = vmul.f32 %v673, %v678
      %682 = vxpose.xlu0.b32.start [1/16] %v680, 128
      %683 = vxpose.xlu0.b32.cont [2/16] %v681, 128
      %684 = vxpose.xlu0.b32.cont [3/16] 0.0, 128
      %685 = vxpose.xlu0.b32.cont [4/16] 0.0, 128
      %686 = vxpose.xlu0.b32.cont [5/16] 0.0, 128
      %687 = vxpose.xlu0.b32.cont [6/16] 0.0, 128
      %688 = vxpose.xlu0.b32.cont [7/16] 0.0, 128
      %689 = vxpose.xlu0.b32.cont [8/16] 0.0, 128
      %690 = vxpose.xlu0.b32.cont [9/16] 0.0, 128
      %691 = vxpose.xlu0.b32.cont [10/16] 0.0, 128
      %692 = vxpose.xlu0.b32.cont [11/16] 0.0, 128
      %693 = vxpose.xlu0.b32.cont [12/16] 0.0, 128
      %694 = vxpose.xlu0.b32.cont [13/16] 0.0, 128
      %695 = vxpose.xlu0.b32.cont [14/16] 0.0, 128
      %696 = vxpose.xlu0.b32.cont [15/16] 0.0, 128
      %697 = vxpose.xlu0.b32.end [16/16] 0.0, 128
      %v698 = vpop.trf.xlu0
      %v699 = vpop.trf.xlu0
      %v700 = vpop.trf.xlu0
      %v701 = vpop.trf.xlu0
      %v702 = vpop.trf.xlu0
      %v703 = vpop.trf.xlu0
      %v704 = vpop.trf.xlu0
      %v705 = vpop.trf.xlu0
      %v706 = vpop.trf.xlu0
      %v707 = vpop.trf.xlu0
      %v708 = vpop.trf.xlu0
      %v709 = vpop.trf.xlu0
      %v710 = vpop.trf.xlu0
      %v711 = vpop.trf.xlu0
      %v712 = vpop.trf.xlu0
      %v713 = vpop.trf.xlu0
      %vm714 = vcmask 130048
      %715 = vst.msk [vmem:[%s294] sm:$0xff] %vm714, %v698
      %716 = vst.msk [vmem:[%s294 + $0x8] sm:$0xff] %vm714, %v699
      %717 = vst.msk [vmem:[%s294 + $0x10] sm:$0xff] %vm714, %v700
      %718 = vst.msk [vmem:[%s294 + $0x18] sm:$0xff] %vm714, %v701
      %719 = vst.msk [vmem:[%s294 + $0x20] sm:$0xff] %vm714, %v702
      %720 = vst.msk [vmem:[%s294 + $0x28] sm:$0xff] %vm714, %v703
      %721 = vst.msk [vmem:[%s294 + $0x30] sm:$0xff] %vm714, %v704
      %722 = vst.msk [vmem:[%s294 + $0x38] sm:$0xff] %vm714, %v705
      %723 = vst.msk [vmem:[%s294 + $0x40] sm:$0xff] %vm714, %v706
      %724 = vst.msk [vmem:[%s294 + $0x48] sm:$0xff] %vm714, %v707
      %725 = vst.msk [vmem:[%s294 + $0x50] sm:$0xff] %vm714, %v708
      %726 = vst.msk [vmem:[%s294 + $0x58] sm:$0xff] %vm714, %v709
      %727 = vst.msk [vmem:[%s294 + $0x60] sm:$0xff] %vm714, %v710
      %728 = vst.msk [vmem:[%s294 + $0x68] sm:$0xff] %vm714, %v711
      %729 = vst.msk [vmem:[%s294 + $0x70] sm:$0xff] %vm714, %v712
      %730 = vst.msk [vmem:[%s294 + $0x78] sm:$0xff] %vm714, %v713
      %s731 = smul.u32 16, %s18
      %p732 = scmp.lt.s32.totalorder %s731, 31
      %s733 = scalar_select %p732, %s731, 31
      %s734 = smul.addr %s733, 8
      %s735 = scalar_lea.vmem %s7, %s734
      // Predicated region
      $region49: #{tpu_custom_call.1} parent=47 // pred_check
        %p736 = pneg %p193
      $region50: #{tpu_custom_call.1} parent=47 // pred_check_branch
        %738 = sbr.rel (%p736) target = $region52
      $region51: #{tpu_custom_call.1} parent=47 // pred_region
        %s739 = smul.u32 16, %s18
      $region52: #{tpu_custom_call.1} parent=47 // pred_fallthru
        _
    $region48: #{tpu_custom_call.1} parent=5 // pred_fallthru
      _
    %p740 = scmp.le.s32.totalorder 2, %s13
    // Predicated region
    $region53: #{tpu_custom_call.1} parent=5 // pred_check
      %p741 = pneg %p740
    $region54: #{tpu_custom_call.1} parent=5 // pred_check_branch
      %743 = sbr.rel (%p741) target = $region56
    $region55: #{tpu_custom_call.1} parent=5 // pred_region
      %s744 = ssub.s32 %s13, 2
      // Predicated region
      $region57: #{tpu_custom_call.1} parent=55 // pred_check
        %p745 = pneg %p199
      $region58: #{tpu_custom_call.1} parent=55 // pred_check_branch
        %747 = sbr.rel (%p745) target = $region60
      $region59: #{tpu_custom_call.1} parent=55 // pred_region
        %s748 = smul.u32 16, %s19
        %p749 = scmp.lt.s32.totalorder %s748, 31
        %s750 = scalar_select %p749, %s748, 31
        %s751 = smul.addr %s750, 8
        %s752 = scalar_lea.vmem %s7, %s751
      $region60: #{tpu_custom_call.1} parent=55 // pred_fallthru
        _
    $region56: #{tpu_custom_call.1} parent=5 // pred_fallthru
      _
  $region6: #{tpu_custom_call.1} parent=0 // loop_footer
    %s17 = sadd.s32 1, %s13
  $region7: #{tpu_custom_call.1} parent=0 // loop_footer_branch
    %12 = sbr.rel target = $region3
  $region8: #{tpu_custom_call.1} parent=0 // loop_exit
    _

</llo_original>
